<compile_context>
chip_gen: v7x
topology: tpu7x:2x2x1
jax: 0.10.0
libtpu: 0.0.40
codegen_flags: <defaults>
</compile_context>

<pallas_src>
import functools

import jax
import jax.numpy as jnp
from jax import lax
from jax.experimental import pallas as pl
from jax.experimental.pallas import tpu as pltpu

_LANE = 128
_UNROLL_MAX = 16                    # max Python-unrolled 128-lane adds per grid step
_SMALL_X_BYTES = 4 * 1024 * 1024    # below this, run the single-block fast path


def _vmem_limit_bytes():
    """Generation-aware scoped-VMEM limit (~75% of physical per-core VMEM)."""
    try:
        cap = int(pltpu.get_tpu_info().vmem_capacity_bytes)
    except Exception:
        cap = 64 * 1024 * 1024      # conservative fallback (v7x per-core VMEM)
    return (cap * 3) // 4           # v7x: ~48 MiB, v5e/v6e: ~96 MiB


# ---------------------------------------------------------------------------
# Small-problem fast path: whole problem in one un-gridded kernel invocation.
# ---------------------------------------------------------------------------
def _classifier_small_kernel(x_ref, w_ref, b_ref, o_ref):
    # x_ref: (N, C, HW) input dtype | w_ref: (C, K_pad) folded weight
    # b_ref: (1, K_pad) f32         | o_ref: (N, K_pad)
    pooled = jnp.sum(x_ref[...].astype(jnp.float32), axis=-1)          # (N, C)
    logits = jnp.dot(pooled, w_ref[...].astype(jnp.float32),
                     preferred_element_type=jnp.float32)
    o_ref[...] = (logits + b_ref[...].astype(jnp.float32)).astype(o_ref.dtype)


# ---------------------------------------------------------------------------
# Streaming path: HW tiled on the trailing "arbitrary" grid axis; partial sums
# land in a 128-lane-wide VPU accumulator; MXU matmul + bias in the epilogue.
# ---------------------------------------------------------------------------
def _classifier_kernel(x_ref, w_ref, b_ref, o_ref, acc_ref, *, tile_hw, rem_last):
    # x_ref  : (n_block, C, tile_hw)  input dtype
    # w_ref  : (C, K_pad)             folded weight (f32 or bf16)
    # b_ref  : (1, K_pad)             f32
    # o_ref  : (n_block, K_pad)       leading grid-block dim squeezed away
    # acc_ref: (n_block, C, 128) f32  lane-wide running spatial sum
    k = pl.program_id(1)
    nk = pl.num_programs(1)

    @pl.when(k == 0)
    def _init():
        acc_ref[...] = jnp.zeros_like(acc_ref)

    def add_slice(start, valid):
        # Load/cast only the 128-lane slice being added (pure VPU work, no XLU).
        sl = x_ref[:, :, start:start + _LANE].astype(jnp.float32)
        if valid < _LANE:                                   # static partial mask
            lane = lax.broadcasted_iota(jnp.int32, sl.shape, 2)
            sl = jnp.where(lane < valid, sl, 0.0)
        acc_ref[...] += sl

    def accum(n_full, partial):
        # n_full full 128-lane slices, then `partial` valid lanes of one more.
        if 0 < n_full <= _UNROLL_MAX:
            for j in range(n_full):                         # unrolled, LLO-visible
                add_slice(j * _LANE, _LANE)
        elif n_full > 0:
            def body(j, carry):
                start = pl.multiple_of(j * _LANE, _LANE)
                acc_ref[...] += x_ref[:, :, pl.ds(start, _LANE)].astype(jnp.float32)
                return carry
            lax.fori_loop(0, n_full, body, 0)
        if partial:
            add_slice(n_full * _LANE, partial)

    n_full_tile = tile_hw // _LANE
    if rem_last == tile_hw:                                 # HW divides evenly
        accum(n_full_tile, 0)
    else:
        @pl.when(k < nk - 1)
        def _full_tiles():
            accum(n_full_tile, 0)

        @pl.when(k == nk - 1)
        def _ragged_tile():                                 # masked last spatial tile
            accum(rem_last // _LANE, rem_last % _LANE)

    @pl.when(k == nk - 1)
    def _finalize():
        pooled = jnp.sum(acc_ref[...], axis=-1)             # single lane-reduce
        logits = jnp.dot(pooled, w_ref[...].astype(jnp.float32),
                         preferred_element_type=jnp.float32)
        o_ref[...] = (logits + b_ref[...].astype(jnp.float32)).astype(o_ref.dtype)


def _pick_tiles(N, C, HW, K_pad, x_itemsize, w_itemsize, vmem_limit):
    """Budget-driven (n_block, tile_hw) so all resident buffers fit vmem_limit."""
    # Keep >= 2 batch blocks when N >= 2 so the "parallel" axis can be split
    # across TensorCores (v7x megacore); cap at 8 rows per block.
    n_block = min(N, 8)
    if N >= 2:
        n_block = min(n_block, pl.cdiv(N, 2))

    hw_cap = max(_LANE, (HW // _LANE) * _LANE)   # lane-aligned, never exceeds HW
    headroom = 2 * 1024 * 1024

    while True:
        fixed = (2 * C * K_pad * w_itemsize      # weight block (double-buffered)
                 + 2 * K_pad * 4                 # bias block
                 + n_block * C * _LANE * 4       # f32 lane accumulator scratch
                 + 2 * n_block * K_pad * 4)      # output block
        x_block_cap = min(16 * 1024 * 1024, vmem_limit // 5,
                          (vmem_limit - headroom - fixed) // 2)
        per_hw_bytes = max(1, n_block * C * x_itemsize)
        tile_hw = (x_block_cap // per_hw_bytes) // _LANE * _LANE
        tile_hw = min(tile_hw, hw_cap)
        if tile_hw >= _LANE or n_block == 1:
            break
        n_block = max(1, n_block // 2)

    # TODO(synk): if even a (1, C, 128) block exceeds VMEM (C ~> 1e5 in f32),
    # the channel axis would also need tiling; not handled here.
    return n_block, max(tile_hw, _LANE)


@jax.jit
def classifier_forward(x_nchw, weight, bias):
    """x_nchw: (N, C, H, W); weight: (K, C) PyTorch Linear layout; bias: (K,)."""
    N, C, H, W = x_nchw.shape
    K = weight.shape[0]
    HW = H * W
    out_dtype = x_nchw.dtype
    x_itemsize = jnp.dtype(x_nchw.dtype).itemsize
    K_pad = pl.cdiv(K, _LANE) * _LANE            # lane-dense output/weight columns

    # Fold the 1/(H*W) mean into the weight; pad K lane-dense (tiny tensors).
    w_dtype = jnp.bfloat16 if x_nchw.dtype == jnp.bfloat16 else jnp.float32
    w_t = (weight.T.astype(jnp.float32) * (1.0 / HW)).astype(w_dtype)
    w_t = jnp.pad(w_t, ((0, 0), (0, K_pad - K)))                       # (C, K_pad)
    b_row = jnp.pad(bias.astype(jnp.float32), (0, K_pad - K)).reshape(1, K_pad)

    x3 = x_nchw.reshape(N, C, HW)                # contiguous reshape, no copy
    vmem_limit = _vmem_limit_bytes()
    x_bytes = N * C * HW * x_itemsize

    if x_bytes <= _SMALL_X_BYTES:
        # Tiny problem: single un-gridded kernel (no grid/pipelining overhead).
        out_padded = pl.pallas_call(
            _classifier_small_kernel,
            out_shape=jax.ShapeDtypeStruct((N, K_pad), out_dtype),
            compiler_params=pltpu.CompilerParams(vmem_limit_bytes=vmem_limit),
        )(x3, w_t, b_row)
    else:
        if HW < _LANE:
            # Rare skinny-spatial case: pad up to one lane so blocks are aligned
            # (zeros don't change the spatial sum; mean fold uses the true HW).
            x3 = jnp.pad(x3, ((0, 0), (0, 0), (0, _LANE - HW)))
            HW_k = _LANE
        else:
            HW_k = HW

        w_itemsize = jnp.dtype(w_dtype).itemsize
        n_block, tile_hw = _pick_tiles(N, C, HW_k, K_pad, x_itemsize,
                                       w_itemsize, vmem_limit)
        nb = pl.cdiv(N, n_block)
        nk = pl.cdiv(HW_k, tile_hw)
        rem_last = HW_k - (nk - 1) * tile_hw

        kernel = functools.partial(_classifier_kernel,
                                   tile_hw=tile_hw, rem_last=rem_last)
        cost = pl.CostEstimate(
            flops=N * C * HW + 2 * N * C * K,
            transcendentals=0,
            bytes_accessed=(x_bytes + w_t.size * w_itemsize + b_row.size * 4
                            + N * K_pad * jnp.dtype(out_dtype).itemsize),
        )

        out3 = pl.pallas_call(
            kernel,
            out_shape=jax.ShapeDtypeStruct((nb, n_block, K_pad), out_dtype),
            grid_spec=pltpu.PrefetchScalarGridSpec(
                num_scalar_prefetch=0,
                grid=(nb, nk),
                in_specs=[
                    pl.BlockSpec((n_block, C, tile_hw), lambda i, k: (i, 0, k)),
                    pl.BlockSpec((C, K_pad), lambda i, k: (0, 0)),
                    pl.BlockSpec((1, K_pad), lambda i, k: (0, 0)),
                ],
                out_specs=pl.BlockSpec((None, n_block, K_pad),
                                       lambda i, k: (i, 0, 0)),
                scratch_shapes=[pltpu.VMEM((n_block, C, _LANE), jnp.float32)],
            ),
            compiler_params=pltpu.CompilerParams(
                dimension_semantics=("parallel", "arbitrary"),
                vmem_limit_bytes=vmem_limit,
            ),
            cost_estimate=cost,
        )(x3, w_t, b_row)
        # Drop padded batch-tail rows (their values are garbage by construction).
        out_padded = out3.reshape(nb * n_block, K_pad)[:N]

    out = out_padded[:, :K]
    # torch.squeeze drops the batch dim when N == 1 (before the Linear).
    return out[0] if N == 1 else out


if __name__ == "__main__":
    # config = {'classifier_in': 4, 'n_classes': 8}
    key = jax.random.PRNGKey(0)
    kx, kw, kb, kx2 = jax.random.split(key, 4)
    K = 8

    # ---- 1) Module-sized check (N=2, C=4, 16x16): exercises the small path.
    N, C, H, W = 2, 4, 16, 16
    x = jax.random.normal(kx, (N, C, H, W), dtype=jnp.float32)
    weight = jax.random.normal(kw, (K, C), dtype=jnp.float32) * 0.1
    bias = jax.random.normal(kb, (K,), dtype=jnp.float32) * 0.1

    out = jax.block_until_ready(classifier_forward(x, weight, bias))
    ref = jnp.mean(x, axis=(2, 3)) @ weight.T + bias
    assert out.shape == (N, K)
    assert jnp.allclose(out, ref, atol=1e-4, rtol=1e-4)

    # ---- 2) Larger check: exercises the streaming (gridded) path, including
    #         the ragged last spatial tile (HW = 1600 is not a tile multiple).
    N2, C2, H2, W2 = 4, 256, 40, 40
    x2 = jax.random.normal(kx2, (N2, C2, H2, W2), dtype=jnp.float32)
    weight2 = jax.random.normal(kw, (K, C2), dtype=jnp.float32) * 0.05
    bias2 = jax.random.normal(kb, (K,), dtype=jnp.float32) * 0.1

    out2 = jax.block_until_ready(classifier_forward(x2, weight2, bias2))
    ref2 = jnp.mean(x2, axis=(2, 3)) @ weight2.T + bias2
    assert out2.shape == (N2, K)
    assert jnp.allclose(out2, ref2, atol=1e-4, rtol=1e-4)

    print("KERNEL_OK")
</pallas_src>

<mosaic_0001>
module attributes {stable_mosaic.version = 11 : i64} {
  func.func @_classifier_small_kernel(%arg0: memref<2x4x256xf32, #tpu.memory_space<vmem>>, %arg1: memref<4x128xf32, #tpu.memory_space<vmem>>, %arg2: memref<1x128xf32, #tpu.memory_space<vmem>>, %arg3: memref<2x128xf32, #tpu.memory_space<vmem>>) attributes {dimension_semantics = [], scalar_prefetch = 0 : i64, scratch_operands = 0 : i64, tpu.core_type = #tpu.core_type<tc>} {
    %c0 = arith.constant 0 : index
    %c0_0 = arith.constant 0 : index
    %c0_1 = arith.constant 0 : index
    %0 = vector.load %arg0[%c0, %c0_0, %c0_1] : memref<2x4x256xf32, #tpu.memory_space<vmem>>, vector<2x4x256xf32>
    %cst = arith.constant dense<0.000000e+00> : vector<2x4xf32>
    %1 = vector.multi_reduction <add>, %0, %cst [2] : vector<2x4x256xf32> to vector<2x4xf32>
    %c0_2 = arith.constant 0 : index
    %c0_3 = arith.constant 0 : index
    %2 = vector.load %arg1[%c0_2, %c0_3] : memref<4x128xf32, #tpu.memory_space<vmem>>, vector<4x128xf32>
    %cst_4 = arith.constant dense<0.000000e+00> : vector<2x128xf32>
    %3 = tpu.matmul %1, %2, %cst_4 {dimension_numbers = #tpu.dot_dimension_numbers<[1], [0], [0], [1], [0, 0, 1, 1], [], []>} : vector<2x4xf32>, vector<4x128xf32>, vector<2x128xf32> -> vector<2x128xf32>
    %c0_5 = arith.constant 0 : index
    %c0_6 = arith.constant 0 : index
    %4 = vector.load %arg2[%c0_5, %c0_6] : memref<1x128xf32, #tpu.memory_space<vmem>>, vector<1x128xf32>
    %5 = vector.broadcast %4 : vector<1x128xf32> to vector<2x128xf32>
    %6 = arith.addf %3, %5 : vector<2x128xf32>
    %c0_7 = arith.constant 0 : index
    %c0_8 = arith.constant 0 : index
    %7 = vector.load %arg3[%c0_7, %c0_8] : memref<2x128xf32, #tpu.memory_space<vmem>>, vector<2x128xf32>
    tpu.vector_store %arg3[%c0_7, %c0_8], %6 {strides = array<i32>} : memref<2x128xf32, #tpu.memory_space<vmem>>, vector<2x128xf32>,
    return
  }
}

</mosaic_0001>

<llo_original>
// kernel: classifier_forward.1
$region0: #{classifier_forward.1}
  #allocation0 [shape = 'u32[]', space=smem, size = 0x4, offset = 0x4, fixed_abs, tag = 'smem constant byte address 0x4 - core index']
  #allocation1 [shape = 'u32[144,128]{1,0:T(1,128)}', space=vmem, size = 0x12000, scoped, tag = 'internal scratch']
  %s0 = inlined_call_operand.vmem [shape: f32[2,4,256], index: 0, kind: input, shape index: {}]
  %s1 = inlined_call_operand.vmem [shape: f32[4,128], index: 1, kind: input, shape index: {}]
  %s2 = inlined_call_operand.vmem [shape: f32[1,128], index: 2, kind: input, shape index: {}]
  %s3 = inlined_call_operand.hbm [shape: f32[2,128], index: 3, kind: output, shape index: {}]
  %s4 = sld [smem:[#allocation0]]
  $region22: #{classifier_forward.1} parent=0
    _
  %s6 = ssub.s32 1, %s4
  %s7 = scalar_select 0, %s6, %s4
  $region1: #{classifier_forward.1} parent=0
    #allocation2 [shape = 'u8[1024]{0}', space=vmem, size = 0x400, scoped, tag = 'output window, operand 0, single buffered']
    #allocation3 [shape = 's32[1]{0}', space=sflag, size = 0x4, scoped, tag = 'scoped memory for classifier_forward.1']
    %8 = vsyncpa [#allocation3], 0
    // Predicated region
    $region2: #{classifier_forward.1} parent=1 // pred_check
      _
    $region3: #{classifier_forward.1} parent=1 // pred_check_branch
      %10 = sbr.rel (0) target = $region5
    $region4: #{classifier_forward.1} parent=1 // pred_region
      _
    $region5: #{classifier_forward.1} parent=1 // pred_fallthru
      _
    // Predicated region
    $region6: #{classifier_forward.1} parent=1 // pred_check
      _
    $region7: #{classifier_forward.1} parent=1 // pred_check_branch
      %12 = sbr.rel (0) target = $region9
    $region8: #{classifier_forward.1} parent=1 // pred_region
      _
    $region9: #{classifier_forward.1} parent=1 // pred_fallthru
      _
    // Predicated region
    $region10: #{classifier_forward.1} parent=1 // pred_check
      _
    $region11: #{classifier_forward.1} parent=1 // pred_check_branch
      %14 = sbr.rel (0) target = $region13
    $region12: #{classifier_forward.1} parent=1 // pred_region
      _
    $region13: #{classifier_forward.1} parent=1 // pred_fallthru
      _
    %v15 = vld [vmem:[%s0] sm:$0xff]
    %v16 = vld [vmem:[%s0 + $0x8] sm:$0xff]
    %v19 = vcombine.high %v15, %v15
    %v20 = vcombine.high %v16, %v16
    %vm23 = vcmask 1043456
    %v24 = vsel %vm23, %v15, 0.0
    %v25 = vsel %vm23, %v19, 0.0
    %v26 = vadd.f32 %v24, %v25
    %27 = vadd.xlane.f32.xlu0 %v26
    %v28 = vpop.xlane.xlu0 %27
    %v29 = vsel %vm23, %v16, 0.0
    %v30 = vsel %vm23, %v20, 0.0
    %v31 = vadd.f32 %v29, %v30
    %32 = vadd.xlane.f32.xlu0 %v31
    %v33 = vpop.xlane.xlu0 %32
    %v34 = vld [vmem:[%s1] sm:$0xf]
    %v35 = vld [vmem:[%s2] sm:$0x1]
    %v37 = vlaneseq
    %v38 = vshrl.u32 %v37, 7
    %v39 = vsub.s32 0, %v38
    %v40 = vrot.slane %v35, %v39
    %v44 = vlaneseq
    %v45 = vand.u32 %v44, 127
    %v46 = vlaneseq
    %v47 = vshrl.u32 %v46, 7
    %v48 = vsub.s32 %v45, %v47
    %v49 = vrot.slane %v28, %v48
    %v50 = vlaneseq
    %v51 = vshrl.u32 %v50, 7
    %v52 = vsub.s32 %v45, %v51
    %v53 = vrot.slane %v33, %v52
    %vm54 = vcmask 1041409
    %v55 = vsel %vm54, %v53, %v49
    %vm56 = vcmask 31744
    %v57 = vsel %vm56, %v55, 0
    %v60 = vsel %vm23, %v34, 0
    %62 = vmatprep.subr.mxu0 0.0
    %63 = vmatpush1.msra.mxu0 %v60
    %64 = vmatprep.subr.mxu0 0.0
    %65 = vmatpush1.msra.mxu0 0.0
    %66 = vmatprep.subr.mxu0 0.0
    %67 = vmatpush1.msra.mxu0 0.0
    %68 = vmatprep.subr.mxu0 0.0
    %69 = vmatpush1.msra.mxu0 0.0
    %70 = vmatprep.subr.mxu0 0.0
    %71 = vmatpush1.msra.mxu0 0.0
    %72 = vmatprep.subr.mxu0 0.0
    %73 = vmatpush1.msra.mxu0 0.0
    %74 = vmatprep.subr.mxu0 0.0
    %75 = vmatpush1.msra.mxu0 0.0
    %76 = vmatprep.subr.mxu0 0.0
    %77 = vmatpush1.msra.mxu0 0.0
    %78 = vmatprep.subr.mxu0 0.0
    %79 = vmatpush1.msra.mxu0 0.0
    %80 = vmatprep.subr.mxu0 0.0
    %81 = vmatpush1.msra.mxu0 0.0
    %82 = vmatprep.subr.mxu0 0.0
    %83 = vmatpush1.msra.mxu0 0.0
    %84 = vmatprep.subr.mxu0 0.0
    %85 = vmatpush1.msra.mxu0 0.0
    %86 = vmatprep.subr.mxu0 0.0
    %87 = vmatpush1.msra.mxu0 0.0
    %88 = vmatprep.subr.mxu0 0.0
    %89 = vmatpush1.msra.mxu0 0.0
    %90 = vmatprep.subr.mxu0 0.0
    %91 = vmatpush1.msra.mxu0 0.0
    %92 = vmatprep.subr.mxu0 0.0
    %93 = vmatpush1.msra.mxu0 0.0
    %94 = vmatprep.subr.mxu0 0.0
    %95 = vmatpush1.msra.mxu0 0.0
    %96 = vmatprep.subr.mxu0 0.0
    %97 = vmatpush1.msra.mxu0 0.0
    %98 = vmatprep.subr.mxu0 0.0
    %99 = vmatpush1.msra.mxu0 0.0
    %100 = vmatprep.subr.mxu0 0.0
    %101 = vmatpush1.msra.mxu0 0.0
    %102 = vmatprep.subr.mxu0 0.0
    %103 = vmatpush1.msra.mxu0 0.0
    %104 = vmatprep.subr.mxu0 0.0
    %105 = vmatpush1.msra.mxu0 0.0
    %106 = vmatprep.subr.mxu0 0.0
    %107 = vmatpush1.msra.mxu0 0.0
    %108 = vmatprep.subr.mxu0 0.0
    %109 = vmatpush1.msra.mxu0 0.0
    %110 = vmatprep.subr.mxu0 0.0
    %111 = vmatpush1.msra.mxu0 0.0
    %112 = vmatprep.subr.mxu0 0.0
    %113 = vmatpush1.msra.mxu0 0.0
    %114 = vmatprep.subr.mxu0 0.0
    %115 = vmatpush1.msra.mxu0 0.0
    %116 = vmatprep.subr.mxu0 0.0
    %117 = vmatpush1.msra.mxu0 0.0
    %118 = vmatprep.subr.mxu0 0.0
    %119 = vmatpush1.msra.mxu0 0.0
    %120 = vmatprep.subr.mxu0 0.0
    %121 = vmatpush1.msra.mxu0 0.0
    %122 = vmatprep.subr.mxu0 0.0
    %123 = vmatpush1.msra.mxu0 0.0
    %124 = vmatprep.subr.mxu0 0.0
    %125 = vmatpush1.msra.mxu0 0.0
    %126 = vmatprep.mubr.f32.mxu0 0.0
    %127 = vmatmul.mubr.f32.gmra.mrb[0].mxu0 %v57
    %v128 = vpop.f32.mrb[0].mxu0
    %v129 = vadd.f32 %v40, %v128
    %v130 = vpop.f32.mrb[0].mxu0
    %131 = vdwg.mxu0
    %132 = vst [vmem:[#allocation2] sm:$0x3] %v129
    // Predicated region
    $region14: #{classifier_forward.1} parent=1 // pred_check
      _
    $region15: #{classifier_forward.1} parent=1 // pred_check_branch
      %134 = sbr.rel (0) target = $region17
    $region16: #{classifier_forward.1} parent=1 // pred_region
      %s136 = ssub.s32 32, 32
      %137 = vsyncadd [#allocation3], %s136
      %s139 = sshll.u32 [#allocation2], 4
      %s140 = int_to_ptr.vmem [resolvable:$true] %s139
      %142 = dma.vmem_to_hbm [thread:$0]  %s140, 32, %s3, [#allocation3]
    $region17: #{classifier_forward.1} parent=1 // pred_fallthru
      _
    // Predicated region
    $region18: #{classifier_forward.1} parent=1 // pred_check
      _
    $region19: #{classifier_forward.1} parent=1 // pred_check_branch
      %144 = sbr.rel (0) target = $region21
    $region20: #{classifier_forward.1} parent=1 // pred_region
      %145 = dma.done [#allocation3], 32
    $region21: #{classifier_forward.1} parent=1 // pred_fallthru
      _
    %146 = vsyncpa [#allocation3], 1

</llo_original>
